<compile_context>
chip_gen: v7x
topology: tpu7x:2x2x1
jax: 0.10.0
libtpu: 0.0.40
codegen_flags: <defaults>
</compile_context>

<pallas_src>
import jax
import jax.numpy as jnp
from jax.experimental import pallas as pl
from jax.experimental.pallas import tpu as pltpu


def _custom_loss_kernel(x_ref, c_ref, logc_ref, rho_ref, out_ref,
                        acc_ref, rexp_ref, rx_ref):
    """Grid = (parallel_I_chunk, j_block, i_block); i_block innermost.

    Scratch (all f32 VMEM, per TensorCore):
      acc_ref  (j_blk, 1): running per-row partial sums.  Holds the sum_i X*rho
                           contributions of every visited row plus, after each
                           j-block's fold, the C-dependent terms.  Only its
                           grand total is ever used, so it is reset only at
                           (j==0, i==0) of each parallel chunk.
      rexp_ref (j_blk, 1): per-row sum_i exp(-rho) of the CURRENT j-block.
      rx_ref   (j_blk, 1): per-row sum_i X         of the CURRENT j-block.

    NOTE: scratch is per-core; a core runs its share of the leading "parallel"
    axis as an outer sequential loop, so the (j==0, i==0) re-initialisation is
    correct for every chunk it executes (chunks are never interleaved).
    """
    j = pl.program_id(1)
    i = pl.program_id(2)
    n_j = pl.num_programs(1)
    n_i = pl.num_programs(2)

    @pl.when((j == 0) & (i == 0))
    def _init_chunk():
        acc_ref[...] = jnp.zeros_like(acc_ref)

    @pl.when(i == 0)
    def _init_block_rows():
        rexp_ref[...] = jnp.zeros_like(rexp_ref)
        rx_ref[...] = jnp.zeros_like(rx_ref)

    x = x_ref[...].astype(jnp.float32)        # (j_blk, i_blk)
    rho = rho_ref[...].astype(jnp.float32)    # (j_blk, i_blk)

    # Per-row lane-axis reductions only; no full-tile accumulator RMW.
    acc_ref[...] += jnp.sum(x * rho, axis=1, keepdims=True)
    rexp_ref[...] += jnp.sum(jnp.exp(-rho), axis=1, keepdims=True)
    rx_ref[...] += jnp.sum(x, axis=1, keepdims=True)

    @pl.when(i == n_i - 1)
    def _fold_c():
        # Apply C once per j-block: acc_j += C_j * S_exp_j - log(C_j) * S_x_j.
        # log(C) is precomputed host-side (C <= 0 gives NaN/inf exactly like
        # the reference module).
        c = c_ref[...].astype(jnp.float32)        # (j_blk, 1)
        logc = logc_ref[...].astype(jnp.float32)  # (j_blk, 1)
        acc_ref[...] += c * rexp_ref[...] - logc * rx_ref[...]

    @pl.when((j == n_j - 1) & (i == n_i - 1))
    def _finalize():
        total = jnp.sum(acc_ref[...])
        rows = jax.lax.broadcasted_iota(jnp.int32, out_ref.shape, 0)
        cols = jax.lax.broadcasted_iota(jnp.int32, out_ref.shape, 1)
        # Single unmasked, lane-dense (8, 128) store: total at [0, 0], 0 elsewhere.
        out_ref[...] = jnp.where((rows == 0) & (cols == 0), total, 0.0)


def _round_up(x, m):
    return ((x + m - 1) // m) * m


def _sublane_align(*dtypes):
    """Row (sublane) alignment: 8 for 4-byte, 16 for 2-byte, 32 for 1-byte dtypes."""
    a = 8
    for dt in dtypes:
        isz = jnp.dtype(dt).itemsize
        a = max(a, 8 * max(1, 4 // isz))
    return a


def _device_config():
    """Per-generation defaults (block target, VMEM budget, parallel chunks, buffers)."""
    try:
        kind = jax.devices()[0].device_kind.lower()
    except Exception:
        kind = ""
    if "7" in kind:
        # v7x: 64 MiB VMEM/TC, 2 TCs/chip -> cap budget, use both cores, 3 buffers.
        return dict(target_i=4096, vmem=48 * 1024 * 1024, num_par=2, bufs=3)
    if "v5" in kind or "v6" in kind:
        # v5e/v6e: 128 MiB VMEM, single TC, purely HBM-bound -> bigger tiles.
        return dict(target_i=4096, vmem=64 * 1024 * 1024, num_par=1, bufs=2)
    return dict(target_i=2048, vmem=32 * 1024 * 1024, num_par=1, bufs=2)


def custom_loss(X_ji, C_j, rho_ji, *, target_j_block=256, target_i_block=None,
                vmem_limit_bytes=None, num_parallel_chunks=None):
    """Pallas TPU implementation of CustomLoss.forward -> scalar mean loss (f32)."""
    J, I = X_ji.shape
    assert rho_ji.shape == (J, I), (rho_ji.shape, (J, I))
    assert C_j.shape == (J, 1), (C_j.shape, (J, 1))

    cfg = _device_config()
    if target_i_block is None:
        target_i_block = cfg["target_i"]
    if vmem_limit_bytes is None:
        vmem_limit_bytes = cfg["vmem"]
    buffer_count = cfg["bufs"]

    # --- block / padding selection -------------------------------------------
    j_align = _sublane_align(X_ji.dtype, rho_ji.dtype, C_j.dtype)
    j_blk = min(_round_up(target_j_block, j_align), _round_up(J, j_align))
    J_pad = _round_up(J, j_blk)
    n_j = J_pad // j_blk

    i_blk = min(_round_up(target_i_block, 128), _round_up(I, 128))
    num_par = cfg["num_par"] if num_parallel_chunks is None else num_parallel_chunks
    num_par = max(1, int(num_par))
    if pl.cdiv(I, i_blk) < 2:
        num_par = 1
    I_pad = _round_up(I, i_blk * num_par)
    n_i_total = I_pad // i_blk
    n_i = n_i_total // num_par

    pad_j = J_pad - J
    pad_i = I_pad - I
    if pad_j or pad_i:
        Xp = jnp.pad(X_ji, ((0, pad_j), (0, pad_i)))
        rhop = jnp.pad(rho_ji, ((0, pad_j), (0, pad_i)))
        Cp = jnp.pad(C_j, ((0, pad_j), (0, 0)), constant_values=1)
        # Exact correction for padded cells (X=0, rho=0, C_pad=1):
        #   real rows, padded cols contribute C_j each; padded rows contribute 1 each.
        correction = (pad_i * jnp.sum(C_j.astype(jnp.float32))
                      + jnp.float32(pad_j * I_pad))
    else:
        Xp, rhop, Cp = X_ji, rho_ji, C_j
        correction = jnp.float32(0.0)
    logCp = jnp.log(Cp.astype(jnp.float32))   # keep log() off the kernel's EUP path

    # --- specs -----------------------------------------------------------------
    grid = (num_par, n_j, n_i)

    def data_idx(p, jj, ii):
        return (jj, p * n_i + ii)

    def data_spec():
        if buffer_count != 2:
            try:
                return pl.BlockSpec((j_blk, i_blk), data_idx,
                                    pipeline_mode=pl.Buffered(buffer_count))
            except TypeError:
                pass
        return pl.BlockSpec((j_blk, i_blk), data_idx)

    c_spec = pl.BlockSpec((j_blk, 1), lambda p, jj, ii: (jj, 0))
    logc_spec = pl.BlockSpec((j_blk, 1), lambda p, jj, ii: (jj, 0))

    try:
        cost = pl.CostEstimate(
            flops=6 * J * I,
            transcendentals=J * I,
            bytes_accessed=(J * I * (jnp.dtype(X_ji.dtype).itemsize
                                     + jnp.dtype(rho_ji.dtype).itemsize)
                            + J * (jnp.dtype(C_j.dtype).itemsize + 4)
                            + 8 * 128 * num_par * 4))
    except TypeError:
        cost = None

    out = pl.pallas_call(
        _custom_loss_kernel,
        out_shape=jax.ShapeDtypeStruct((8, 128 * num_par), jnp.float32),
        grid_spec=pltpu.PrefetchScalarGridSpec(
            num_scalar_prefetch=0,
            grid=grid,
            in_specs=[
                data_spec(),    # X
                c_spec,         # C
                logc_spec,      # log(C)
                data_spec(),    # rho
            ],
            out_specs=pl.BlockSpec((8, 128), lambda p, jj, ii: (0, p)),
            scratch_shapes=[
                pltpu.VMEM((j_blk, 1), jnp.float32),   # acc: running partial sums
                pltpu.VMEM((j_blk, 1), jnp.float32),   # per-row sum exp(-rho)
                pltpu.VMEM((j_blk, 1), jnp.float32),   # per-row sum X
            ],
        ),
        compiler_params=pltpu.CompilerParams(
            dimension_semantics=("parallel", "arbitrary", "arbitrary"),
            vmem_limit_bytes=vmem_limit_bytes,
        ),
        cost_estimate=cost,
    )(Xp, Cp, logCp, rhop)

    # Only the (0, p*128) entries are non-zero; sum gathers per-chunk partials.
    total = jnp.sum(out) - correction
    return total * jnp.float32(1.0 / (J * I))


def custom_loss_ref(X_ji, C_j, rho_ji):
    """Pure-JAX reference matching the PyTorch module."""
    term1 = X_ji * rho_ji
    term2 = C_j * jnp.exp(-rho_ji)
    term3 = X_ji * jnp.log(C_j)
    return jnp.mean(term1 + term2 - term3)


if __name__ == "__main__":
    keys = jax.random.split(jax.random.PRNGKey(0), 9)

    # --- Test 1: aligned shapes; small block targets so the full (p, j, i)
    # grid, per-j-block C fold, and cross-step accumulators are exercised.
    J, I = 24, 1024
    X = jax.random.uniform(keys[0], (J, I), dtype=jnp.float32, minval=0.1, maxval=2.0)
    C = jax.random.uniform(keys[1], (J, 1), dtype=jnp.float32, minval=0.5, maxval=3.0)
    rho = jax.random.uniform(keys[2], (J, I), dtype=jnp.float32, minval=-1.0, maxval=1.0)
    loss = custom_loss(X, C, rho, target_j_block=8, target_i_block=256)
    jax.block_until_ready(loss)
    ref = custom_loss_ref(X, C, rho)
    assert jnp.allclose(loss, ref, rtol=1e-5, atol=1e-6), (loss, ref)

    # --- Test 2: awkward shapes -> wrapper padding + exact correction path.
    J2, I2 = 10, 300
    X2 = jax.random.uniform(keys[3], (J2, I2), dtype=jnp.float32, minval=0.1, maxval=2.0)
    C2 = jax.random.uniform(keys[4], (J2, 1), dtype=jnp.float32, minval=0.5, maxval=3.0)
    rho2 = jax.random.uniform(keys[5], (J2, I2), dtype=jnp.float32, minval=-1.0, maxval=1.0)
    loss2 = custom_loss(X2, C2, rho2, target_j_block=8, target_i_block=256)
    jax.block_until_ready(loss2)
    ref2 = custom_loss_ref(X2, C2, rho2)
    assert jnp.allclose(loss2, ref2, rtol=1e-5, atol=1e-5), (loss2, ref2)

    # --- Test 3: bf16 inputs (sublane-aligned j blocks), f32 C.
    J3, I3 = 48, 512
    X3 = jax.random.uniform(keys[6], (J3, I3), dtype=jnp.float32,
                            minval=0.1, maxval=2.0).astype(jnp.bfloat16)
    C3 = jax.random.uniform(keys[7], (J3, 1), dtype=jnp.float32, minval=0.5, maxval=3.0)
    rho3 = jax.random.uniform(keys[8], (J3, I3), dtype=jnp.float32,
                              minval=-1.0, maxval=1.0).astype(jnp.bfloat16)
    loss3 = custom_loss(X3, C3, rho3, target_i_block=256)
    jax.block_until_ready(loss3)
    ref3 = custom_loss_ref(X3.astype(jnp.float32), C3, rho3.astype(jnp.float32))
    assert jnp.allclose(loss3, ref3, rtol=1e-4, atol=1e-4), (loss3, ref3)

    print("KERNEL_OK")
</pallas_src>

<mosaic_0001>
module attributes {stable_mosaic.version = 11 : i64} {
  func.func @_custom_loss_kernel(%arg0: i32, %arg1: i32, %arg2: i32, %arg3: memref<8x256xf32, #tpu.memory_space<vmem>>, %arg4: memref<8x1xf32, #tpu.memory_space<vmem>>, %arg5: memref<8x1xf32, #tpu.memory_space<vmem>>, %arg6: memref<8x256xf32, #tpu.memory_space<vmem>>, %arg7: memref<8x128xf32, #tpu.memory_space<vmem>>, %arg8: memref<8x1xf32, #tpu.memory_space<vmem>>, %arg9: memref<8x1xf32, #tpu.memory_space<vmem>>, %arg10: memref<8x1xf32, #tpu.memory_space<vmem>>) attributes {dimension_semantics = [#tpu.dimension_semantics<parallel>, #tpu.dimension_semantics<arbitrary>, #tpu.dimension_semantics<arbitrary>], iteration_bounds = array<i64: 1, 3, 4>, scalar_prefetch = 0 : i64, scratch_operands = 3 : i64, tpu.core_type = #tpu.core_type<tc>, window_params = [{transform_indices = @transform_0, window_bounds = array<i64: 8, 256>}, {transform_indices = @transform_1, window_bounds = array<i64: 8, 1>}, {transform_indices = @transform_2, window_bounds = array<i64: 8, 1>}, {transform_indices = @transform_3, window_bounds = array<i64: 8, 256>}, {transform_indices = @transform_4, window_bounds = array<i64: 8, 128>}]} {
    %c0_i32 = arith.constant 0 : i32
    %0 = arith.cmpi eq, %arg1, %c0_i32 : i32
    %c0_i32_0 = arith.constant 0 : i32
    %1 = arith.cmpi eq, %arg2, %c0_i32_0 : i32
    %2 = arith.andi %0, %1 : i1
    %3 = arith.extui %2 : i1 to i32
    %c0_i32_1 = arith.constant 0 : i32
    %4 = arith.cmpi ne, %3, %c0_i32_1 : i32
    scf.if %4 {
      %cst_25 = arith.constant 0.000000e+00 : f32
      %37 = vector.broadcast %cst_25 : f32 to vector<8x1xf32>
      %c0_26 = arith.constant 0 : index
      %c0_27 = arith.constant 0 : index
      %38 = vector.load %arg8[%c0_26, %c0_27] : memref<8x1xf32, #tpu.memory_space<vmem>>, vector<8x1xf32>
      tpu.vector_store %arg8[%c0_26, %c0_27], %37 {strides = array<i32>} : memref<8x1xf32, #tpu.memory_space<vmem>>, vector<8x1xf32>,
    } else {
    }
    %c0_i32_2 = arith.constant 0 : i32
    %5 = arith.cmpi eq, %arg2, %c0_i32_2 : i32
    %6 = arith.extui %5 : i1 to i32
    %c0_i32_3 = arith.constant 0 : i32
    %7 = arith.cmpi ne, %6, %c0_i32_3 : i32
    scf.if %7 {
      %cst_25 = arith.constant 0.000000e+00 : f32
      %37 = vector.broadcast %cst_25 : f32 to vector<8x1xf32>
      %c0_26 = arith.constant 0 : index
      %c0_27 = arith.constant 0 : index
      %38 = vector.load %arg9[%c0_26, %c0_27] : memref<8x1xf32, #tpu.memory_space<vmem>>, vector<8x1xf32>
      tpu.vector_store %arg9[%c0_26, %c0_27], %37 {strides = array<i32>} : memref<8x1xf32, #tpu.memory_space<vmem>>, vector<8x1xf32>,
      %cst_28 = arith.constant 0.000000e+00 : f32
      %39 = vector.broadcast %cst_28 : f32 to vector<8x1xf32>
      %c0_29 = arith.constant 0 : index
      %c0_30 = arith.constant 0 : index
      %40 = vector.load %arg10[%c0_29, %c0_30] : memref<8x1xf32, #tpu.memory_space<vmem>>, vector<8x1xf32>
      tpu.vector_store %arg10[%c0_29, %c0_30], %39 {strides = array<i32>} : memref<8x1xf32, #tpu.memory_space<vmem>>, vector<8x1xf32>,
    } else {
    }
    %c0 = arith.constant 0 : index
    %c0_4 = arith.constant 0 : index
    %8 = vector.load %arg3[%c0, %c0_4] : memref<8x256xf32, #tpu.memory_space<vmem>>, vector<8x256xf32>
    %c0_5 = arith.constant 0 : index
    %c0_6 = arith.constant 0 : index
    %9 = vector.load %arg6[%c0_5, %c0_6] : memref<8x256xf32, #tpu.memory_space<vmem>>, vector<8x256xf32>
    %c0_7 = arith.constant 0 : index
    %c0_8 = arith.constant 0 : index
    %10 = vector.load %arg8[%c0_7, %c0_8] : memref<8x1xf32, #tpu.memory_space<vmem>>, vector<8x1xf32>
    %11 = arith.mulf %8, %9 : vector<8x256xf32>
    %cst = arith.constant dense<0.000000e+00> : vector<8xf32>
    %12 = vector.multi_reduction <add>, %11, %cst [1] : vector<8x256xf32> to vector<8xf32>
    %13 = vector.shape_cast %12 : vector<8xf32> to vector<8x1xf32>
    %14 = arith.addf %10, %13 : vector<8x1xf32>
    %c0_9 = arith.constant 0 : index
    %c0_10 = arith.constant 0 : index
    %15 = vector.load %arg8[%c0_9, %c0_10] : memref<8x1xf32, #tpu.memory_space<vmem>>, vector<8x1xf32>
    tpu.vector_store %arg8[%c0_9, %c0_10], %14 {strides = array<i32>} : memref<8x1xf32, #tpu.memory_space<vmem>>, vector<8x1xf32>,
    %c0_11 = arith.constant 0 : index
    %c0_12 = arith.constant 0 : index
    %16 = vector.load %arg9[%c0_11, %c0_12] : memref<8x1xf32, #tpu.memory_space<vmem>>, vector<8x1xf32>
    %cst_13 = arith.constant 0.000000e+00 : f32
    %17 = vector.broadcast %cst_13 : f32 to vector<8x256xf32>
    %18 = arith.subf %17, %9 : vector<8x256xf32>
    %19 = math.exp %18 : vector<8x256xf32>
    %cst_14 = arith.constant dense<0.000000e+00> : vector<8xf32>
    %20 = vector.multi_reduction <add>, %19, %cst_14 [1] : vector<8x256xf32> to vector<8xf32>
    %21 = vector.shape_cast %20 : vector<8xf32> to vector<8x1xf32>
    %22 = arith.addf %16, %21 : vector<8x1xf32>
    %c0_15 = arith.constant 0 : index
    %c0_16 = arith.constant 0 : index
    %23 = vector.load %arg9[%c0_15, %c0_16] : memref<8x1xf32, #tpu.memory_space<vmem>>, vector<8x1xf32>
    tpu.vector_store %arg9[%c0_15, %c0_16], %22 {strides = array<i32>} : memref<8x1xf32, #tpu.memory_space<vmem>>, vector<8x1xf32>,
    %c0_17 = arith.constant 0 : index
    %c0_18 = arith.constant 0 : index
    %24 = vector.load %arg10[%c0_17, %c0_18] : memref<8x1xf32, #tpu.memory_space<vmem>>, vector<8x1xf32>
    %cst_19 = arith.constant dense<0.000000e+00> : vector<8xf32>
    %25 = vector.multi_reduction <add>, %8, %cst_19 [1] : vector<8x256xf32> to vector<8xf32>
    %26 = vector.shape_cast %25 : vector<8xf32> to vector<8x1xf32>
    %27 = arith.addf %24, %26 : vector<8x1xf32>
    %c0_20 = arith.constant 0 : index
    %c0_21 = arith.constant 0 : index
    %28 = vector.load %arg10[%c0_20, %c0_21] : memref<8x1xf32, #tpu.memory_space<vmem>>, vector<8x1xf32>
    tpu.vector_store %arg10[%c0_20, %c0_21], %27 {strides = array<i32>} : memref<8x1xf32, #tpu.memory_space<vmem>>, vector<8x1xf32>,
    %c3_i32 = arith.constant 3 : i32
    %29 = arith.cmpi eq, %arg2, %c3_i32 : i32
    %30 = arith.extui %29 : i1 to i32
    %c0_i32_22 = arith.constant 0 : i32
    %31 = arith.cmpi ne, %30, %c0_i32_22 : i32
    scf.if %31 {
      %c0_25 = arith.constant 0 : index
      %c0_26 = arith.constant 0 : index
      %37 = vector.load %arg4[%c0_25, %c0_26] : memref<8x1xf32, #tpu.memory_space<vmem>>, vector<8x1xf32>
      %c0_27 = arith.constant 0 : index
      %c0_28 = arith.constant 0 : index
      %38 = vector.load %arg5[%c0_27, %c0_28] : memref<8x1xf32, #tpu.memory_space<vmem>>, vector<8x1xf32>
      %c0_29 = arith.constant 0 : index
      %c0_30 = arith.constant 0 : index
      %39 = vector.load %arg8[%c0_29, %c0_30] : memref<8x1xf32, #tpu.memory_space<vmem>>, vector<8x1xf32>
      %c0_31 = arith.constant 0 : index
      %c0_32 = arith.constant 0 : index
      %40 = vector.load %arg9[%c0_31, %c0_32] : memref<8x1xf32, #tpu.memory_space<vmem>>, vector<8x1xf32>
      %41 = arith.mulf %37, %40 : vector<8x1xf32>
      %c0_33 = arith.constant 0 : index
      %c0_34 = arith.constant 0 : index
      %42 = vector.load %arg10[%c0_33, %c0_34] : memref<8x1xf32, #tpu.memory_space<vmem>>, vector<8x1xf32>
      %43 = arith.mulf %38, %42 : vector<8x1xf32>
      %44 = arith.subf %41, %43 : vector<8x1xf32>
      %45 = arith.addf %39, %44 : vector<8x1xf32>
      %c0_35 = arith.constant 0 : index
      %c0_36 = arith.constant 0 : index
      %46 = vector.load %arg8[%c0_35, %c0_36] : memref<8x1xf32, #tpu.memory_space<vmem>>, vector<8x1xf32>
      tpu.vector_store %arg8[%c0_35, %c0_36], %45 {strides = array<i32>} : memref<8x1xf32, #tpu.memory_space<vmem>>, vector<8x1xf32>,
    } else {
    }
    %c2_i32 = arith.constant 2 : i32
    %32 = arith.cmpi eq, %arg1, %c2_i32 : i32
    %c3_i32_23 = arith.constant 3 : i32
    %33 = arith.cmpi eq, %arg2, %c3_i32_23 : i32
    %34 = arith.andi %32, %33 : i1
    %35 = arith.extui %34 : i1 to i32
    %c0_i32_24 = arith.constant 0 : i32
    %36 = arith.cmpi ne, %35, %c0_i32_24 : i32
    scf.if %36 {
      %c0_25 = arith.constant 0 : index
      %c0_26 = arith.constant 0 : index
      %37 = vector.load %arg8[%c0_25, %c0_26] : memref<8x1xf32, #tpu.memory_space<vmem>>, vector<8x1xf32>
      %38 = vector.shape_cast %37 : vector<8x1xf32> to vector<1x8x1xf32>
      %cst_27 = arith.constant dense<0.000000e+00> : vector<1xf32>
      %39 = vector.multi_reduction <add>, %38, %cst_27 [1, 2] : vector<1x8x1xf32> to vector<1xf32>
      %40 = vector.shape_cast %39 : vector<1xf32> to vector<1x1x1xf32>
      %41 = vector.extract %40[0, 0, 0] : f32 from vector<1x1x1xf32>
      %42 = tpu.iota {dimensions = array<i32: 0>} : vector<8x128xi32>
      %43 = tpu.iota {dimensions = array<i32: 1>} : vector<8x128xi32>
      %c0_i32_28 = arith.constant 0 : i32
      %44 = vector.broadcast %c0_i32_28 : i32 to vector<8x128xi32>
      %45 = arith.cmpi eq, %42, %44 : vector<8x128xi32>
      %c0_i32_29 = arith.constant 0 : i32
      %46 = vector.broadcast %c0_i32_29 : i32 to vector<8x128xi32>
      %47 = arith.cmpi eq, %43, %46 : vector<8x128xi32>
      %48 = arith.andi %45, %47 : vector<8x128xi1>
      %cst_30 = arith.constant 0.000000e+00 : f32
      %49 = vector.broadcast %41 : f32 to vector<8x128xf32>
      %50 = vector.broadcast %cst_30 : f32 to vector<8x128xf32>
      %51 = arith.select %48, %49, %50 : vector<8x128xi1>, vector<8x128xf32>
      %c0_31 = arith.constant 0 : index
      %c0_32 = arith.constant 0 : index
      %52 = vector.load %arg7[%c0_31, %c0_32] : memref<8x128xf32, #tpu.memory_space<vmem>>, vector<8x128xf32>
      tpu.vector_store %arg7[%c0_31, %c0_32], %51 {strides = array<i32>} : memref<8x128xf32, #tpu.memory_space<vmem>>, vector<8x128xf32>,
    } else {
    }
    return
  }
  func.func @transform_0(%arg0: i32, %arg1: i32, %arg2: i32) -> (i32, i32) {
    %c4_i32 = arith.constant 4 : i32
    %0 = arith.muli %arg0, %c4_i32 : i32
    %1 = arith.addi %0, %arg2 : i32
    %c0_i32 = arith.constant 0 : i32
    return %arg1, %1 : i32, i32
  }
  func.func @transform_1(%arg0: i32, %arg1: i32, %arg2: i32) -> (i32, i32) {
    %c0_i32 = arith.constant 0 : i32
    %c0_i32_0 = arith.constant 0 : i32
    return %arg1, %c0_i32 : i32, i32
  }
  func.func @transform_2(%arg0: i32, %arg1: i32, %arg2: i32) -> (i32, i32) {
    %c0_i32 = arith.constant 0 : i32
    %c0_i32_0 = arith.constant 0 : i32
    return %arg1, %c0_i32 : i32, i32
  }
  func.func @transform_3(%arg0: i32, %arg1: i32, %arg2: i32) -> (i32, i32) {
    %c4_i32 = arith.constant 4 : i32
    %0 = arith.muli %arg0, %c4_i32 : i32
    %1 = arith.addi %0, %arg2 : i32
    %c0_i32 = arith.constant 0 : i32
    return %arg1, %1 : i32, i32
  }
  func.func @transform_4(%arg0: i32, %arg1: i32, %arg2: i32) -> (i32, i32) {
    %c0_i32 = arith.constant 0 : i32
    %c0_i32_0 = arith.constant 0 : i32
    return %c0_i32, %arg0 : i32, i32
  }
}

</mosaic_0001>

<llo_original>
// kernel: tpu_custom_call.1
$region0: #{tpu_custom_call.1}
  #allocation0 [shape = 'u32[]', space=smem, size = 0x4, offset = 0x4, fixed_abs, tag = 'smem constant byte address 0x4 - core index']
  #allocation1 [shape = 'u32[144,128]{1,0:T(1,128)}', space=vmem, size = 0x12000, scoped, tag = 'internal scratch']
  #allocation2 [shape = 'f32[8,1]{1,0:T(8,128)}', space=vmem, size = 0x1000, scoped, tag = 'scratch operand']
  #allocation3 [shape = 'f32[8,1]{1,0:T(8,128)}', space=vmem, size = 0x1000, scoped, tag = 'scratch operand']
  #allocation4 [shape = 'f32[8,1]{1,0:T(8,128)}', space=vmem, size = 0x1000, scoped, tag = 'scratch operand']
  %s0 = inlined_call_operand.hbm [shape: f32[24,1024], index: 0, kind: input, shape index: {}]
  %s1 = inlined_call_operand.vmem [shape: f32[24,1], index: 1, kind: input, shape index: {}]
  %s2 = inlined_call_operand.vmem [shape: f32[24,1], index: 2, kind: input, shape index: {}]
  %s3 = inlined_call_operand.hbm [shape: f32[24,1024], index: 3, kind: input, shape index: {}]
  %s4 = inlined_call_operand.hbm [shape: f32[8,128], index: 4, kind: output, shape index: {}]
  %s5 = sld [smem:[#allocation0]]
  $region73: #{tpu_custom_call.1} parent=0
    _
  %s7 = ssub.s32 1, %s5
  %s8 = scalar_select 0, %s7, %s5
  $region1: #{tpu_custom_call.1} parent=0
    #allocation5 [shape = 'u8[16384]{0}', space=vmem, size = 0x4000, scoped, tag = 'input window, operand 0']
    #allocation6 [shape = 's32[2]{0}', space=sflag, size = 0x8, scoped, tag = 'scoped memory for tpu_custom_call.1']
    #allocation7 [shape = 's32[2]{0}', space=sflag, size = 0x8, scoped, tag = 'scoped memory for tpu_custom_call.1']
    #allocation8 [shape = 'u8[16384]{0}', space=vmem, size = 0x4000, scoped, tag = 'input window, operand 3']
    #allocation9 [shape = 's32[2]{0}', space=sflag, size = 0x8, scoped, tag = 'scoped memory for tpu_custom_call.1']
    #allocation10 [shape = 'u8[4096]{0}', space=vmem, size = 0x1000, scoped, tag = 'output window, operand 0, single buffered']
    %9 = vsyncpa [#allocation6], 0
    %s10 = scalar_lea.sflag [#allocation6], 1
    %11 = vsyncpa %s10, 0
    %12 = vsyncpa [#allocation9], 0
    %s13 = scalar_lea.sflag [#allocation9], 1
    %14 = vsyncpa %s13, 0
    %15 = vsyncpa [#allocation7], 0
    loop: start=0, step=1, limit=14
    $region2: #{tpu_custom_call.1} parent=1 // loop_pre_header
      _
    $region3: #{tpu_custom_call.1} parent=1 // loop_header
      %s17 = sphi 0, %s21
      %p18 = scmp.ge.s32.totalorder %s17, 14
      %s24 = sphi 0, %s43
      %s25 = sphi 0, %s39
      %s26 = sphi 0, %s35
      %s27 = sphi 0, %s24
      %s28 = sphi 0, %s25
      %s29 = sphi 0, %s26
      %s30 = sphi 0, %s27
      %s31 = sphi 0, %s28
      %s32 = sphi 0, %s29
      %s52 = sphi 0, %s54
      %s55 = sphi 0, %s52
      %s56 = sphi 0, %s55
      %s72 = sphi 0, %s56
      %s78 = sphi 0, %s80
      %s81 = sphi 0, %s78
      %s82 = sphi 0, %s81
      %s98 = sphi 0, %s82
      %s104 = sphi 0, %s106
      %s107 = sphi 0, %s104
      %s108 = sphi 0, %s107
      %s124 = sphi 0, %s108
      %s136 = sphi 0, %s138
      %s139 = sphi 0, %s136
      %s140 = sphi 0, %s139
      %s156 = sphi 0, %s140
      %s162 = sphi 0, %s164
      %s165 = sphi 0, %s162
      %s166 = sphi 0, %s165
      %s182 = sphi 0, %s166
    $region4: #{tpu_custom_call.1} parent=1 // loop_header_branch
      %20 = sbr.rel (%p18) target = $region8
    $region5: #{tpu_custom_call.1} parent=1 // loop_body
      %s22 = ssub.s32 %s17, 1
      %s23 = ssub.s32 %s17, 2
      %s33 = sadd.s32 1, %s26
      %p34 = scmp.ge.s32.totalorder %s33, 4
      %s35 = scalar_select %p34, 0, %s33
      %s36 = sadd.s32 1, %s25
      %s37 = scalar_select %p34, %s36, %s25
      %p38 = scmp.ge.s32.totalorder %s37, 3
      %s39 = scalar_select %p38, 0, %s37
      %s40 = sadd.s32 1, %s24
      %s41 = scalar_select %p38, %s40, %s24
      %p42 = scmp.ge.s32.totalorder %s41, 1
      %s43 = scalar_select %p42, 0, %s41
      %s44 = smul.u32 %s24, 4
      %s45 = sadd.s32 %s44, %s26
      %s46 = smul.u32 %s43, 4
      %s47 = sadd.s32 %s46, %s35
      %s48 = ssub.s32 %s25, %s39
      %s49 = ssub.s32 %s45, %s47
      %s50 = sor.u32 %s48, %s49
      %p51 = scmp.eq.s32.totalorder %s50, 0
      %s53 = sadd.s32 %s52, 1
      %s54 = scalar_select %p51, %s52, %s53
      %p57 = pneg %p51
      %p58 = scmp.eq.s32.totalorder %s17, 11
      %p59 = por %p57, %p58
      %p60 = scmp.ne.s32.totalorder %s52, %s55
      %p61 = scmp.eq.s32.totalorder %s17, 0
      %p62 = por %p60, %p61
      %p63 = scmp.ne.s32.totalorder %s52, %s55
      %p64 = scmp.eq.s32.totalorder %s22, 11
      %p65 = por %p63, %p64
      %p66 = scmp.ne.s32.totalorder %s55, %s56
      %p67 = scmp.eq.s32.totalorder %s22, 0
      %p68 = por %p66, %p67
      %p69 = scmp.ne.s32.totalorder %s55, %s56
      %p70 = scmp.eq.s32.totalorder %s23, 11
      %p71 = por %p69, %p70
      %p73 = scmp.ne.s32.totalorder %s56, %s72
      %p74 = scmp.eq.s32.totalorder %s23, 0
      %p75 = por %p73, %p74
      %s76 = ssub.s32 %s25, %s39
      %p77 = scmp.eq.s32.totalorder %s76, 0
      %s79 = sadd.s32 %s78, 1
      %s80 = scalar_select %p77, %s78, %s79
      %p83 = pneg %p77
      %p84 = scmp.eq.s32.totalorder %s17, 11
      %p85 = por %p83, %p84
      %p86 = scmp.ne.s32.totalorder %s78, %s81
      %p87 = scmp.eq.s32.totalorder %s17, 0
      %p88 = por %p86, %p87
      %p89 = scmp.ne.s32.totalorder %s78, %s81
      %p90 = scmp.eq.s32.totalorder %s22, 11
      %p91 = por %p89, %p90
      %p92 = scmp.ne.s32.totalorder %s81, %s82
      %p93 = scmp.eq.s32.totalorder %s22, 0
      %p94 = por %p92, %p93
      %p95 = scmp.ne.s32.totalorder %s81, %s82
      %p96 = scmp.eq.s32.totalorder %s23, 11
      %p97 = por %p95, %p96
      %p99 = scmp.ne.s32.totalorder %s82, %s98
      %p100 = scmp.eq.s32.totalorder %s23, 0
      %p101 = por %p99, %p100
      %s102 = ssub.s32 %s25, %s39
      %p103 = scmp.eq.s32.totalorder %s102, 0
      %s105 = sadd.s32 %s104, 1
      %s106 = scalar_select %p103, %s104, %s105
      %p109 = pneg %p103
      %p110 = scmp.eq.s32.totalorder %s17, 11
      %p111 = por %p109, %p110
      %p112 = scmp.ne.s32.totalorder %s104, %s107
      %p113 = scmp.eq.s32.totalorder %s17, 0
      %p114 = por %p112, %p113
      %p115 = scmp.ne.s32.totalorder %s104, %s107
      %p116 = scmp.eq.s32.totalorder %s22, 11
      %p117 = por %p115, %p116
      %p118 = scmp.ne.s32.totalorder %s107, %s108
      %p119 = scmp.eq.s32.totalorder %s22, 0
      %p120 = por %p118, %p119
      %p121 = scmp.ne.s32.totalorder %s107, %s108
      %p122 = scmp.eq.s32.totalorder %s23, 11
      %p123 = por %p121, %p122
      %p125 = scmp.ne.s32.totalorder %s108, %s124
      %p126 = scmp.eq.s32.totalorder %s23, 0
      %p127 = por %p125, %p126
      %s128 = smul.u32 %s24, 4
      %s129 = sadd.s32 %s128, %s26
      %s130 = smul.u32 %s43, 4
      %s131 = sadd.s32 %s130, %s35
      %s132 = ssub.s32 %s25, %s39
      %s133 = ssub.s32 %s129, %s131
      %s134 = sor.u32 %s132, %s133
      %p135 = scmp.eq.s32.totalorder %s134, 0
      %s137 = sadd.s32 %s136, 1
      %s138 = scalar_select %p135, %s136, %s137
      %p141 = pneg %p135
      %p142 = scmp.eq.s32.totalorder %s17, 11
      %p143 = por %p141, %p142
      %p144 = scmp.ne.s32.totalorder %s136, %s139
      %p145 = scmp.eq.s32.totalorder %s17, 0
      %p146 = por %p144, %p145
      %p147 = scmp.ne.s32.totalorder %s136, %s139
      %p148 = scmp.eq.s32.totalorder %s22, 11
      %p149 = por %p147, %p148
      %p150 = scmp.ne.s32.totalorder %s139, %s140
      %p151 = scmp.eq.s32.totalorder %s22, 0
      %p152 = por %p150, %p151
      %p153 = scmp.ne.s32.totalorder %s139, %s140
      %p154 = scmp.eq.s32.totalorder %s23, 11
      %p155 = por %p153, %p154
      %p157 = scmp.ne.s32.totalorder %s140, %s156
      %p158 = scmp.eq.s32.totalorder %s23, 0
      %p159 = por %p157, %p158
      %s160 = ssub.s32 %s24, %s43
      %p161 = scmp.eq.s32.totalorder %s160, 0
      %s163 = sadd.s32 %s162, 1
      %s164 = scalar_select %p161, %s162, %s163
      %p167 = pneg %p161
      %p168 = scmp.eq.s32.totalorder %s17, 11
      %p169 = por %p167, %p168
      %p170 = scmp.ne.s32.totalorder %s162, %s165
      %p171 = scmp.eq.s32.totalorder %s17, 0
      %p172 = por %p170, %p171
      %p173 = scmp.ne.s32.totalorder %s162, %s165
      %p174 = scmp.eq.s32.totalorder %s22, 11
      %p175 = por %p173, %p174
      %p176 = scmp.ne.s32.totalorder %s165, %s166
      %p177 = scmp.eq.s32.totalorder %s22, 0
      %p178 = por %p176, %p177
      %p179 = scmp.ne.s32.totalorder %s165, %s166
      %p180 = scmp.eq.s32.totalorder %s23, 11
      %p181 = por %p179, %p180
      %p183 = scmp.ne.s32.totalorder %s166, %s182
      %p184 = scmp.eq.s32.totalorder %s23, 0
      %p185 = por %p183, %p184
      %p186 = scmp.le.s32.totalorder 1, %s17
      %p187 = scmp.lt.s32.totalorder %s17, 13
      %p188 = pnand %p186, %p187
      %p189 = pneg %p188
      // Predicated region
      $region9: #{tpu_custom_call.1} parent=5 // pred_check
        _
      $region10: #{tpu_custom_call.1} parent=5 // pred_check_branch
        %191 = sbr.rel (%p188) target = $region12
      $region11: #{tpu_custom_call.1} parent=5 // pred_region
        %s192 = ssub.s32 %s17, 1
      $region12: #{tpu_custom_call.1} parent=5 // pred_fallthru
        _
      %p193 = scmp.lt.s32.totalorder %s17, 12
      // Predicated region
      $region13: #{tpu_custom_call.1} parent=5 // pred_check
        %p194 = pneg %p193
      $region14: #{tpu_custom_call.1} parent=5 // pred_check_branch
        %196 = sbr.rel (%p194) target = $region16
      $region15: #{tpu_custom_call.1} parent=5 // pred_region
        // Predicated region
        $region17: #{tpu_custom_call.1} parent=15 // pred_check
          %p197 = pneg %p62
        $region18: #{tpu_custom_call.1} parent=15 // pred_check_branch
          %199 = sbr.rel (%p197) target = $region20
        $region19: #{tpu_custom_call.1} parent=15 // pred_region
          %s200 = sand.u32 %s52, 1
          %s201 = scalar_lea.sflag [#allocation6], %s200
          %s202 = sand.u32 %s52, 1
          %s203 = smul.addr %s202, 16
          %s204 = scalar_lea.vmem [#allocation5], %s203
          %s205 = smul.u32 %s24, 4
          %s206 = sadd.s32 %s205, %s26
          %s207 = smul.u32 2, %s206
          %s209 = ssub.s32 256, 256
          %210 = vsyncadd %s201, %s209
          %s211 = smul.addr %s25, 8
          %s212 = sadd.s32 %s207, %s211
          %s213 = smul.addr %s212, 128
          %s214 = scalar_lea.hbm %s0, %s213
          %s216 = sshll.u32 %s204, 4
          %s217 = int_to_ptr.vmem [resolvable:$true] %s216
          %219 = dma.hbm_to_vmem [thread:$0]  %s214, 256, %s217, %s201
        $region20: #{tpu_custom_call.1} parent=15 // pred_fallthru
          _
        // Predicated region
        $region21: #{tpu_custom_call.1} parent=15 // pred_check
          %p220 = pneg %p88
        $region22: #{tpu_custom_call.1} parent=15 // pred_check_branch
          %222 = sbr.rel (%p220) target = $region24
        $region23: #{tpu_custom_call.1} parent=15 // pred_region
          %p223 = scmp.lt.s32.totalorder %s25, 2
          %s224 = scalar_select %p223, %s25, 2
          %s225 = smul.addr %s224, 8
          %s226 = scalar_lea.vmem %s1, %s225
        $region24: #{tpu_custom_call.1} parent=15 // pred_fallthru
          _
        // Predicated region
        $region25: #{tpu_custom_call.1} parent=15 // pred_check
          %p227 = pneg %p114
        $region26: #{tpu_custom_call.1} parent=15 // pred_check_branch
          %229 = sbr.rel (%p227) target = $region28
        $region27: #{tpu_custom_call.1} parent=15 // pred_region
          %p230 = scmp.lt.s32.totalorder %s25, 2
          %s231 = scalar_select %p230, %s25, 2
          %s232 = smul.addr %s231, 8
          %s233 = scalar_lea.vmem %s2, %s232
        $region28: #{tpu_custom_call.1} parent=15 // pred_fallthru
          _
        // Predicated region
        $region29: #{tpu_custom_call.1} parent=15 // pred_check
          %p234 = pneg %p146
        $region30: #{tpu_custom_call.1} parent=15 // pred_check_branch
          %236 = sbr.rel (%p234) target = $region32
        $region31: #{tpu_custom_call.1} parent=15 // pred_region
          %s237 = sand.u32 %s136, 1
          %s238 = scalar_lea.sflag [#allocation9], %s237
          %s239 = sand.u32 %s136, 1
          %s240 = smul.addr %s239, 16
          %s241 = scalar_lea.vmem [#allocation8], %s240
          %s242 = smul.u32 %s24, 4
          %s243 = sadd.s32 %s242, %s26
          %s244 = smul.u32 2, %s243
          %s246 = ssub.s32 256, 256
          %247 = vsyncadd %s238, %s246
          %s248 = smul.addr %s25, 8
          %s249 = sadd.s32 %s244, %s248
          %s250 = smul.addr %s249, 128
          %s251 = scalar_lea.hbm %s3, %s250
          %s253 = sshll.u32 %s241, 4
          %s254 = int_to_ptr.vmem [resolvable:$true] %s253
          %256 = dma.hbm_to_vmem [thread:$0]  %s251, 256, %s254, %s238
        $region32: #{tpu_custom_call.1} parent=15 // pred_fallthru
          _
      $region16: #{tpu_custom_call.1} parent=5 // pred_fallthru
        _
      %p257 = scmp.le.s32.totalorder 1, %s17
      %p258 = scmp.lt.s32.totalorder %s17, 13
      %p259 = pnand %p257, %p258
      %p260 = pneg %p259
      // Predicated region
      $region33: #{tpu_custom_call.1} parent=5 // pred_check
        _
      $region34: #{tpu_custom_call.1} parent=5 // pred_check_branch
        %262 = sbr.rel (%p259) target = $region36
      $region35: #{tpu_custom_call.1} parent=5 // pred_region
        %s263 = ssub.s32 %s17, 1
        %s264 = sand.u32 %s55, 1
        %s265 = scalar_lea.sflag [#allocation6], %s264
        %s266 = sand.u32 %s55, 1
        %s267 = smul.addr %s266, 16
        %s268 = scalar_lea.vmem [#allocation5], %s267
        // Predicated region
        $region37: #{tpu_custom_call.1} parent=35 // pred_check
          %p269 = pneg %p68
        $region38: #{tpu_custom_call.1} parent=35 // pred_check_branch
          %271 = sbr.rel (%p269) target = $region40
        $region39: #{tpu_custom_call.1} parent=35 // pred_region
          %272 = dma.done %s265, 256
        $region40: #{tpu_custom_call.1} parent=35 // pred_fallthru
          _
        %s273 = sand.u32 %s139, 1
        %s274 = scalar_lea.sflag [#allocation9], %s273
        %s275 = sand.u32 %s139, 1
        %s276 = smul.addr %s275, 16
        %s277 = scalar_lea.vmem [#allocation8], %s276
        // Predicated region
        $region41: #{tpu_custom_call.1} parent=35 // pred_check
          %p278 = pneg %p152
        $region42: #{tpu_custom_call.1} parent=35 // pred_check_branch
          %280 = sbr.rel (%p278) target = $region44
        $region43: #{tpu_custom_call.1} parent=35 // pred_region
          %281 = dma.done %s274, 256
        $region44: #{tpu_custom_call.1} parent=35 // pred_fallthru
          _
        %s282 = sand.u32 %s55, 1
        %s283 = scalar_lea.sflag [#allocation6], %s282
        %s284 = sand.u32 %s55, 1
        %s285 = smul.addr %s284, 16
        %s286 = scalar_lea.vmem [#allocation5], %s285
        %p287 = pneg %p68
        %p288 = pneg %p65
        %p289 = scmp.lt.s32.totalorder %s28, 2
        %s290 = scalar_select %p289, %s28, 2
        %s291 = smul.addr %s290, 8
        %s292 = scalar_lea.vmem %s1, %s291
        %p293 = pneg %p94
        %p294 = pneg %p91
        %p295 = scmp.lt.s32.totalorder %s28, 2
        %s296 = scalar_select %p295, %s28, 2
        %s297 = smul.addr %s296, 8
        %s298 = scalar_lea.vmem %s2, %s297
        %p299 = pneg %p120
        %p300 = pneg %p117
        %s301 = sand.u32 %s139, 1
        %s302 = scalar_lea.sflag [#allocation9], %s301
        %s303 = sand.u32 %s139, 1
        %s304 = smul.addr %s303, 16
        %s305 = scalar_lea.vmem [#allocation8], %s304
        %p306 = pneg %p152
        %p307 = pneg %p149
        %p308 = pneg %p178
        %p309 = pneg %p175
        %s310 = smul.u32 %s27, 4
        %s311 = sadd.s32 %s310, %s29
        %s312 = smul.u32 2, %s311
        %p313 = scmp.lt.s32.totalorder %s28, 2
        %s314 = scalar_select %p313, %s28, 2
        %s315 = smul.addr %s314, 8
        %s316 = scalar_lea.vmem %s1, %s315
        %p317 = scmp.lt.s32.totalorder %s28, 2
        %s318 = scalar_select %p317, %s28, 2
        %s319 = smul.addr %s318, 8
        %s320 = scalar_lea.vmem %s2, %s319
        %s321 = smul.u32 %s27, 4
        %s322 = sadd.s32 %s321, %s29
        %s323 = smul.u32 2, %s322
        %p324 = scmp.eq.s32.totalorder %s28, 0
        %p325 = scmp.eq.s32.totalorder %s29, 0
        %p326 = pnand %p324, %p325
        %p327 = pneg %p326
        // Predicated region
        $region45: #{tpu_custom_call.1} parent=35 // pred_check
          _
        $region46: #{tpu_custom_call.1} parent=35 // pred_check_branch
          %329 = sbr.rel (%p326) target = $region48
        $region47: #{tpu_custom_call.1} parent=35 // pred_region
          %vm330 = vcmask 7168
          %331 = vst.msk [vmem:[#allocation2] sm:$0xff] %vm330, 0.0
        $region48: #{tpu_custom_call.1} parent=35 // pred_fallthru
          _
        // Predicated region
        $region49: #{tpu_custom_call.1} parent=35 // pred_check
          %p332 = pneg %p325
        $region50: #{tpu_custom_call.1} parent=35 // pred_check_branch
          %334 = sbr.rel (%p332) target = $region52
        $region51: #{tpu_custom_call.1} parent=35 // pred_region
          %vm335 = vcmask 7168
          %336 = vst.msk [vmem:[#allocation3] sm:$0xff] %vm335, 0.0
          %337 = vst.msk [vmem:[#allocation4] sm:$0xff] %vm335, 0.0
        $region52: #{tpu_custom_call.1} parent=35 // pred_fallthru
          _
        %v338 = vld [vmem:[%s268] sm:$0xff]
        %v339 = vld [vmem:[%s268 + $0x8] sm:$0xff]
        %v340 = vld [vmem:[%s277] sm:$0xff]
        %v341 = vld [vmem:[%s277 + $0x8] sm:$0xff]
        %v342 = vld [vmem:[#allocation2] sm:$0xff]
        %v343 = vmul.f32 %v338, %v340
        %v344 = vmul.f32 %v339, %v341
        %v345 = vadd.f32 %v343, %v344
        %346 = vadd.xlane.f32.xlu0 %v345
        %v347 = vpop.xlane.xlu0 %346
        %v348 = vadd.f32 %v342, %v347
        %vm349 = vcmask 7168
        %350 = vst.msk [vmem:[#allocation2] sm:$0xff] %vm349, %v348
        %v351 = vld [vmem:[#allocation3] sm:$0xff]
        %v352 = vsub.f32 0.0, %v340
        %v353 = vsub.f32 0.0, %v341
        %v354 = vmul.f32 %v352, 1.442695
        %v355 = vpow.pop %v354
        %v356 = vmul.f32 %v353, 1.442695
        %v357 = vpow.pop %v356
        %v358 = vadd.f32 %v355, %v357
        %359 = vadd.xlane.f32.xlu0 %v358
        %v360 = vpop.xlane.xlu0 %359
        %v361 = vadd.f32 %v351, %v360
        %362 = vst.msk [vmem:[#allocation3] sm:$0xff] %vm349, %v361
        %v363 = vld [vmem:[#allocation4] sm:$0xff]
        %v364 = vadd.f32 %v338, %v339
        %365 = vadd.xlane.f32.xlu0 %v364
        %v366 = vpop.xlane.xlu0 %365
        %v367 = vadd.f32 %v363, %v366
        %368 = vst.msk [vmem:[#allocation4] sm:$0xff] %vm349, %v367
        %p369 = scmp.eq.s32.totalorder %s29, 3
        // Predicated region
        $region53: #{tpu_custom_call.1} parent=35 // pred_check
          %p370 = pneg %p369
        $region54: #{tpu_custom_call.1} parent=35 // pred_check_branch
          %372 = sbr.rel (%p370) target = $region56
        $region55: #{tpu_custom_call.1} parent=35 // pred_region
          %v373 = vld [vmem:[%s316] sm:$0xff]
          %v374 = vld [vmem:[%s320] sm:$0xff]
          %v375 = vld [vmem:[#allocation2] sm:$0xff]
          %v376 = vld [vmem:[#allocation3] sm:$0xff]
          %v377 = vmul.f32 %v373, %v376
          %v378 = vld [vmem:[#allocation4] sm:$0xff]
          %v379 = vmul.f32 %v374, %v378
          %v380 = vsub.f32 %v377, %v379
          %v381 = vadd.f32 %v375, %v380
          %382 = vst.msk [vmem:[#allocation2] sm:$0xff] %vm349, %v381
        $region56: #{tpu_custom_call.1} parent=35 // pred_fallthru
          _
        %p383 = scmp.eq.s32.totalorder %s28, 2
        %p384 = pnand %p383, %p369
        %p385 = pneg %p384
        // Predicated region
        $region57: #{tpu_custom_call.1} parent=35 // pred_check
          _
        $region58: #{tpu_custom_call.1} parent=35 // pred_check_branch
          %387 = sbr.rel (%p384) target = $region60
        $region59: #{tpu_custom_call.1} parent=35 // pred_region
          %v388 = vld [vmem:[#allocation2] sm:$0xff]
          %v389 = vsel %vm349, %v388, 0.0
          %390 = vadd.xlane.f32.xlu0 %v389
          %v391 = vpop.xlane.xlu0 %390
          %v392 = vrot.slane %v391, 4
          %v393 = vadd.f32 %v391, %v392
          %v394 = vrot.slane %v393, 2
          %v395 = vadd.f32 %v393, %v394
          %v396 = vrot.slane %v395, 1
          %v397 = vadd.f32 %v395, %v396
          %s398 = vtos %v397
          %v399 = vlaneseq
          %v400 = vshrl.u32 %v399, 7
          %v401 = vlaneseq
          %v402 = vand.u32 %v401, 127
          %vm403 = vcmp.eq.s32.totalorder %v400, 0
          %vm404 = vcmp.eq.s32.totalorder %v402, 0
          %vm405 = vmand %vm403, %vm404
          %v406 = vstv %s398
          %v407 = vsel %vm405, %v406, 0.0
          %408 = vst [vmem:[#allocation10] sm:$0xff] %v407
        $region60: #{tpu_custom_call.1} parent=35 // pred_fallthru
          _
        // Predicated region
        $region61: #{tpu_custom_call.1} parent=35 // pred_check
          %p409 = pneg %p175
        $region62: #{tpu_custom_call.1} parent=35 // pred_check_branch
          %411 = sbr.rel (%p409) target = $region64
        $region63: #{tpu_custom_call.1} parent=35 // pred_region
          %s413 = ssub.s32 128, 128
          %414 = vsyncadd [#allocation7], %s413
          %s415 = smul.addr %s27, 128
          %s416 = scalar_lea.hbm %s4, %s415
          %s418 = sshll.u32 [#allocation10], 4
          %s419 = int_to_ptr.vmem [resolvable:$true] %s418
          %421 = dma.vmem_to_hbm [thread:$0]  %s419, 128, %s416, [#allocation7]
        $region64: #{tpu_custom_call.1} parent=35 // pred_fallthru
          _
        // Predicated region
        $region65: #{tpu_custom_call.1} parent=35 // pred_check
          %p422 = pneg %p175
        $region66: #{tpu_custom_call.1} parent=35 // pred_check_branch
          %424 = sbr.rel (%p422) target = $region68
        $region67: #{tpu_custom_call.1} parent=35 // pred_region
          %425 = dma.done [#allocation7], 128
        $region68: #{tpu_custom_call.1} parent=35 // pred_fallthru
          _
      $region36: #{tpu_custom_call.1} parent=5 // pred_fallthru
        _
      %p426 = scmp.le.s32.totalorder 2, %s17
      // Predicated region
      $region69: #{tpu_custom_call.1} parent=5 // pred_check
        %p427 = pneg %p426
      $region70: #{tpu_custom_call.1} parent=5 // pred_check_branch
        %429 = sbr.rel (%p427) target = $region72
      $region71: #{tpu_custom_call.1} parent=5 // pred_region
        %s430 = ssub.s32 %s17, 2
      $region72: #{tpu_custom_call.1} parent=5 // pred_fallthru
        _
    $region6: #{tpu_custom_call.1} parent=1 // loop_footer
      %s21 = sadd.s32 1, %s17
    $region7: #{tpu_custom_call.1} parent=1 // loop_footer_branch
      %16 = sbr.rel target = $region3
    $region8: #{tpu_custom_call.1} parent=1 // loop_exit
      _
    %431 = vsyncpa [#allocation6], 1
    %s432 = scalar_lea.sflag [#allocation6], 1
    %433 = vsyncpa %s432, 1
    %434 = vsyncpa [#allocation9], 1
    %s435 = scalar_lea.sflag [#allocation9], 1
    %436 = vsyncpa %s435, 1
    %437 = vsyncpa [#allocation7], 1
    %s438 = scalar_lea.sflag [#allocation7], 1
    %439 = vsyncpa %s438, 1

</llo_original>
